<compile_context>
chip_gen: v7x
topology: tpu7x:2x2x1
jax: 0.10.0
libtpu: 0.0.40
codegen_flags: <defaults>
</compile_context>

<pallas_src>
import numpy as np
import jax
import jax.numpy as jnp
from jax.experimental import pallas as pl
from jax.experimental.pallas import tpu as pltpu

LANES = 512            # logical last dim (lane-dense, multiple of 128)
MAX_BLOCK_ROWS = 512   # (512, 512) f32 block = 1 MiB per array


def _round_up(x, m):
    return ((x + m - 1) // m) * m


def _dropedge_kernel(thresh_ref, inv_keep_ref, bits_ref, vals_ref,
                     newvals_ref, mask_ref):
    thresh = thresh_ref[0]          # uint32 threshold = round(keepRate * 2^32)
    inv_keep = inv_keep_ref[0]      # f32 1/keepRate (hoisted reciprocal)

    # torch: mask = floor(rand + keepRate).bool()  <=>  keep w.p. keepRate
    keep_mask = bits_ref[...] < thresh

    newvals_ref[...] = jnp.where(keep_mask, vals_ref[...] * inv_keep,
                                 jnp.float32(0.0))
    mask_ref[...] = keep_mask.astype(jnp.int8)


def sp_adj_drop_edge(idxs, vals, keep_rate, key=None):
    """idxs: (2, E) int32 COO indices; vals: (E,) float values.

    Returns (new_idxs, new_vals, mask) mirroring the torch module's
    boolean-drop + rescale semantics.
    """
    # keepRate == 1.0 shortcut, same as the torch module (eager-only check).
    if float(keep_rate) == 1.0:
        return idxs, vals, jnp.ones((vals.shape[0],), dtype=bool)

    if key is None:
        key = jax.random.PRNGKey(0)

    E = vals.shape[0]
    rows = pl.cdiv(E, LANES)
    # block rows: multiple of 32 (int8 packed tile), capped for VMEM budget.
    block_rows = min(MAX_BLOCK_ROWS, _round_up(max(rows, 1), 32))
    num_blocks = pl.cdiv(rows, block_rows)
    rows_pad = num_blocks * block_rows
    E_pad = rows_pad * LANES

    vals_p = jnp.pad(vals.astype(jnp.float32), (0, E_pad - E))
    vals2d = vals_p.reshape(rows_pad, LANES)

    # Uniform random bits generated directly at padded shape (no stateful
    # in-kernel PRNG -> portable to interpret mode as well as real TPUs).
    bits2d = jax.random.bits(key, (rows_pad, LANES), dtype=jnp.uint32)

    thresh_val = min(int(round(float(keep_rate) * 4294967296.0)), 0xFFFFFFFF)
    thresh_arr = jnp.array([thresh_val], dtype=jnp.uint32)
    inv_keep_arr = jnp.array([1.0 / float(keep_rate)], dtype=jnp.float32)

    newvals2d, mask2d = pl.pallas_call(
        _dropedge_kernel,
        out_shape=(jax.ShapeDtypeStruct((rows_pad, LANES), jnp.float32),
                   jax.ShapeDtypeStruct((rows_pad, LANES), jnp.int8)),
        grid=(num_blocks,),
        in_specs=[
            pl.BlockSpec(memory_space=pltpu.MemorySpace.SMEM),      # threshold
            pl.BlockSpec(memory_space=pltpu.MemorySpace.SMEM),      # 1/keepRate
            pl.BlockSpec((block_rows, LANES), lambda i: (i, 0)),    # rng bits
            pl.BlockSpec((block_rows, LANES), lambda i: (i, 0)),    # values
        ],
        out_specs=(
            pl.BlockSpec((block_rows, LANES), lambda i: (i, 0)),    # new vals
            pl.BlockSpec((block_rows, LANES), lambda i: (i, 0)),    # mask int8
        ),
        compiler_params=pltpu.CompilerParams(
            dimension_semantics=("parallel",)),
    )(thresh_arr, inv_keep_arr, bits2d, vals2d)

    new_vals_full = newvals2d.reshape(-1)[:E]
    mask = mask2d.reshape(-1)[:E].astype(bool)

    # Dynamic-size compaction: size sync is unavoidable (variable output), but
    # the gathers themselves stay on device (jnp.take), no NumPy boolean index.
    kept = jnp.nonzero(mask)[0]
    new_idxs = jnp.take(idxs, kept, axis=1)
    new_vals = jnp.take(new_vals_full, kept)
    return new_idxs, new_vals, mask


if __name__ == "__main__":
    key = jax.random.PRNGKey(0)
    k1, k2, k3 = jax.random.split(key, 3)

    n_nodes = 32
    E = 2000                         # number of sparse edges
    idxs = jax.random.randint(k1, (2, E), 0, n_nodes, dtype=jnp.int32)
    vals = jax.random.uniform(k2, (E,), dtype=jnp.float32) + 0.1

    keep_rate = 0.5
    new_idxs, new_vals, mask = sp_adj_drop_edge(idxs, vals, keep_rate, key=k3)
    jax.block_until_ready(new_vals)

    # Sanity checks against the reference semantics.
    mask_np = np.asarray(mask)
    vals_np = np.asarray(vals)
    kept_ref = vals_np[mask_np] / keep_rate
    n_kept = int(mask_np.sum())
    assert new_vals.shape[0] == n_kept
    assert new_idxs.shape == (2, n_kept)
    assert np.allclose(np.asarray(new_vals), kept_ref, rtol=1e-5, atol=1e-6)

    # keepRate == 1.0 shortcut returns everything unchanged.
    same_idxs, same_vals, _ = sp_adj_drop_edge(idxs, vals, 1.0)
    assert np.array_equal(np.asarray(same_idxs), np.asarray(idxs))
    assert np.array_equal(np.asarray(same_vals), np.asarray(vals))

    # Dropout rate should be roughly keepRate.
    frac = mask_np.mean()
    assert 0.30 < frac < 0.70, frac

    print("KERNEL_OK")
</pallas_src>

<mosaic_0001>
module attributes {stable_mosaic.version = 11 : i64} {
  func.func @_dropedge_kernel(%arg0: i32, %arg1: memref<1xi32, #tpu.memory_space<smem>>, %arg2: memref<1xf32, #tpu.memory_space<smem>>, %arg3: memref<32x512xi32, #tpu.memory_space<vmem>>, %arg4: memref<32x512xf32, #tpu.memory_space<vmem>>, %arg5: memref<32x512xf32, #tpu.memory_space<vmem>>, %arg6: memref<32x512xi8, #tpu.memory_space<vmem>>) attributes {dimension_semantics = [#tpu.dimension_semantics<parallel>], iteration_bounds = array<i64: 1>, scalar_prefetch = 0 : i64, scratch_operands = 0 : i64, tpu.core_type = #tpu.core_type<tc>, window_params = [{transform_indices = @transform_0, window_bounds = array<i64: 1>}, {transform_indices = @transform_1, window_bounds = array<i64: 1>}, {transform_indices = @transform_2, window_bounds = array<i64: 32, 512>}, {transform_indices = @transform_3, window_bounds = array<i64: 32, 512>}, {transform_indices = @transform_4, window_bounds = array<i64: 32, 512>}, {transform_indices = @transform_5, window_bounds = array<i64: 32, 512>}]} {
    %c0 = arith.constant 0 : index
    %0 = memref.load %arg1[%c0] : memref<1xi32, #tpu.memory_space<smem>>
    %c0_0 = arith.constant 0 : index
    %1 = memref.load %arg2[%c0_0] : memref<1xf32, #tpu.memory_space<smem>>
    %c0_1 = arith.constant 0 : index
    %c0_2 = arith.constant 0 : index
    %2 = vector.load %arg3[%c0_1, %c0_2] : memref<32x512xi32, #tpu.memory_space<vmem>>, vector<32x512xi32>
    %3 = vector.broadcast %0 : i32 to vector<32x512xi32>
    %4 = arith.cmpi ult, %2, %3 : vector<32x512xi32>
    %c0_3 = arith.constant 0 : index
    %c0_4 = arith.constant 0 : index
    %5 = vector.load %arg4[%c0_3, %c0_4] : memref<32x512xf32, #tpu.memory_space<vmem>>, vector<32x512xf32>
    %6 = vector.broadcast %1 : f32 to vector<32x512xf32>
    %7 = arith.mulf %5, %6 : vector<32x512xf32>
    %cst = arith.constant 0.000000e+00 : f32
    %8 = vector.broadcast %cst : f32 to vector<32x512xf32>
    %9 = arith.select %4, %7, %8 : vector<32x512xi1>, vector<32x512xf32>
    %c0_5 = arith.constant 0 : index
    %c0_6 = arith.constant 0 : index
    %10 = vector.load %arg5[%c0_5, %c0_6] : memref<32x512xf32, #tpu.memory_space<vmem>>, vector<32x512xf32>
    tpu.vector_store %arg5[%c0_5, %c0_6], %9 {strides = array<i32>} : memref<32x512xf32, #tpu.memory_space<vmem>>, vector<32x512xf32>,
    %11 = arith.extui %4 : vector<32x512xi1> to vector<32x512xi8>
    %c0_7 = arith.constant 0 : index
    %c0_8 = arith.constant 0 : index
    %12 = vector.load %arg6[%c0_7, %c0_8] : memref<32x512xi8, #tpu.memory_space<vmem>>, vector<32x512xi8>
    tpu.vector_store %arg6[%c0_7, %c0_8], %11 {strides = array<i32>} : memref<32x512xi8, #tpu.memory_space<vmem>>, vector<32x512xi8>,
    return
  }
  func.func @transform_0(%arg0: i32) -> i32 {
    %c0_i32 = arith.constant 0 : i32
    %c0_i32_0 = arith.constant 0 : i32
    return %c0_i32 : i32
  }
  func.func @transform_1(%arg0: i32) -> i32 {
    %c0_i32 = arith.constant 0 : i32
    %c0_i32_0 = arith.constant 0 : i32
    return %c0_i32 : i32
  }
  func.func @transform_2(%arg0: i32) -> (i32, i32) {
    %c0_i32 = arith.constant 0 : i32
    %c0_i32_0 = arith.constant 0 : i32
    return %arg0, %c0_i32 : i32, i32
  }
  func.func @transform_3(%arg0: i32) -> (i32, i32) {
    %c0_i32 = arith.constant 0 : i32
    %c0_i32_0 = arith.constant 0 : i32
    return %arg0, %c0_i32 : i32, i32
  }
  func.func @transform_4(%arg0: i32) -> (i32, i32) {
    %c0_i32 = arith.constant 0 : i32
    %c0_i32_0 = arith.constant 0 : i32
    return %arg0, %c0_i32 : i32, i32
  }
  func.func @transform_5(%arg0: i32) -> (i32, i32) {
    %c0_i32 = arith.constant 0 : i32
    %c0_i32_0 = arith.constant 0 : i32
    return %arg0, %c0_i32 : i32, i32
  }
}

</mosaic_0001>

<llo_original>
// kernel: tpu_custom_call.1
$region0: #{tpu_custom_call.1}
  #allocation0 [shape = 'u32[]', space=smem, size = 0x4, offset = 0x4, fixed_abs, tag = 'smem constant byte address 0x4 - core index']
  #allocation1 [shape = 'u32[144,128]{1,0:T(1,128)}', space=vmem, size = 0x12000, scoped, tag = 'internal scratch']
  #allocation2 [shape = 'u32[1]{0:T(128)S(6)}', space=smem, size = 0x200, scoped, tag = 'scoped memory for tpu_custom_call.1']
  #allocation3 [shape = 'f32[1]{0:T(128)S(6)}', space=smem, size = 0x200, scoped, tag = 'scoped memory for tpu_custom_call.1']
  %s0 = inlined_call_operand.<no memory space> [shape: u32[1], index: 0, kind: input, shape index: {}]
  %s1 = inlined_call_operand.<no memory space> [shape: f32[1], index: 1, kind: input, shape index: {}]
  %s2 = inlined_call_operand.hbm [shape: u32[32,512], index: 2, kind: input, shape index: {}]
  %s3 = inlined_call_operand.hbm [shape: f32[32,512], index: 3, kind: input, shape index: {}]
  %s4 = inlined_call_operand.hbm [shape: f32[32,512], index: 4, kind: output, shape index: {0}]
  %s5 = inlined_call_operand.hbm [shape: s8[32,512], index: 5, kind: output, shape index: {1}]
  %6 = xla_tuple %s4, %s5
  %s7 = sld [smem:[#allocation0]]
  $region42: #{tpu_custom_call.1} parent=0
    _
  %s9 = ssub.s32 1, %s7
  %s10 = scalar_select 0, %s9, %s7
  %11 = sst [smem:[#allocation2]] %s0
  %12 = sst [smem:[#allocation3]] %s1
  $region1: #{tpu_custom_call.1} parent=0
    #allocation4 [shape = 'u8[65536]{0}', space=vmem, size = 0x10000, scoped, tag = 'input window, operand 2, single buffered']
    #allocation5 [shape = 's32[1]{0}', space=sflag, size = 0x4, scoped, tag = 'scoped memory for tpu_custom_call.1']
    #allocation6 [shape = 's32[1]{0}', space=sflag, size = 0x4, scoped, tag = 'scoped memory for tpu_custom_call.1']
    #allocation7 [shape = 'u8[65536]{0}', space=vmem, size = 0x10000, scoped, tag = 'input window, operand 3, single buffered']
    #allocation8 [shape = 's32[1]{0}', space=sflag, size = 0x4, scoped, tag = 'scoped memory for tpu_custom_call.1']
    #allocation9 [shape = 'u8[65536]{0}', space=vmem, size = 0x10000, scoped, tag = 'output window, operand 0, single buffered']
    #allocation10 [shape = 'u8[16384]{0}', space=vmem, size = 0x4000, scoped, tag = 'output window, operand 1, single buffered']
    #allocation11 [shape = 's32[1]{0}', space=sflag, size = 0x4, scoped, tag = 'scoped memory for tpu_custom_call.1']
    %13 = vsyncpa [#allocation5], 0
    %14 = vsyncpa [#allocation8], 0
    %15 = vsyncpa [#allocation6], 0
    %16 = vsyncpa [#allocation11], 0
    // Predicated region
    $region2: #{tpu_custom_call.1} parent=1 // pred_check
      _
    $region3: #{tpu_custom_call.1} parent=1 // pred_check_branch
      %18 = sbr.rel (0) target = $region5
    $region4: #{tpu_custom_call.1} parent=1 // pred_region
      _
    $region5: #{tpu_custom_call.1} parent=1 // pred_fallthru
      _
    // Predicated region
    $region6: #{tpu_custom_call.1} parent=1 // pred_check
      _
    $region7: #{tpu_custom_call.1} parent=1 // pred_check_branch
      %20 = sbr.rel (0) target = $region9
    $region8: #{tpu_custom_call.1} parent=1 // pred_region
      _
    $region9: #{tpu_custom_call.1} parent=1 // pred_fallthru
      _
    // Predicated region
    $region10: #{tpu_custom_call.1} parent=1 // pred_check
      _
    $region11: #{tpu_custom_call.1} parent=1 // pred_check_branch
      %22 = sbr.rel (0) target = $region13
    $region12: #{tpu_custom_call.1} parent=1 // pred_region
      %s24 = ssub.s32 2048, 2048
      %25 = vsyncadd [#allocation5], %s24
      %s26 = sshll.u32 [#allocation4], 4
      %s27 = int_to_ptr.vmem [resolvable:$true] %s26
      %32 = dma.hbm_to_vmem [thread:$0]  %s2, 2048, %s27, [#allocation5], 512, 512, 32
    $region13: #{tpu_custom_call.1} parent=1 // pred_fallthru
      _
    // Predicated region
    $region14: #{tpu_custom_call.1} parent=1 // pred_check
      _
    $region15: #{tpu_custom_call.1} parent=1 // pred_check_branch
      %34 = sbr.rel (0) target = $region17
    $region16: #{tpu_custom_call.1} parent=1 // pred_region
      %s36 = ssub.s32 2048, 2048
      %37 = vsyncadd [#allocation8], %s36
      %s38 = sshll.u32 [#allocation7], 4
      %s39 = int_to_ptr.vmem [resolvable:$true] %s38
      %44 = dma.hbm_to_vmem [thread:$0]  %s3, 2048, %s39, [#allocation8], 512, 512, 32
    $region17: #{tpu_custom_call.1} parent=1 // pred_fallthru
      _
    // Predicated region
    $region18: #{tpu_custom_call.1} parent=1 // pred_check
      _
    $region19: #{tpu_custom_call.1} parent=1 // pred_check_branch
      %46 = sbr.rel (0) target = $region21
    $region20: #{tpu_custom_call.1} parent=1 // pred_region
      %47 = dma.done [#allocation5], 2048
    $region21: #{tpu_custom_call.1} parent=1 // pred_fallthru
      _
    // Predicated region
    $region22: #{tpu_custom_call.1} parent=1 // pred_check
      _
    $region23: #{tpu_custom_call.1} parent=1 // pred_check_branch
      %49 = sbr.rel (0) target = $region25
    $region24: #{tpu_custom_call.1} parent=1 // pred_region
      %50 = dma.done [#allocation8], 2048
    $region25: #{tpu_custom_call.1} parent=1 // pred_fallthru
      _
    %s53 = sld [smem:[#allocation2]]
    %s54 = sld [smem:[#allocation3]]
    %v55 = vld [vmem:[#allocation4] sm:$0xff]
    %v56 = vld [vmem:[#allocation4 + $0x8] sm:$0xff]
    %v57 = vld [vmem:[#allocation4 + $0x10] sm:$0xff]
    %v58 = vld [vmem:[#allocation4 + $0x18] sm:$0xff]
    %v59 = vld [vmem:[#allocation4 + $0x20] sm:$0xff]
    %v60 = vld [vmem:[#allocation4 + $0x28] sm:$0xff]
    %v61 = vld [vmem:[#allocation4 + $0x30] sm:$0xff]
    %v62 = vld [vmem:[#allocation4 + $0x38] sm:$0xff]
    %v63 = vld [vmem:[#allocation4 + $0x40] sm:$0xff]
    %v64 = vld [vmem:[#allocation4 + $0x48] sm:$0xff]
    %v65 = vld [vmem:[#allocation4 + $0x50] sm:$0xff]
    %v66 = vld [vmem:[#allocation4 + $0x58] sm:$0xff]
    %v67 = vld [vmem:[#allocation4 + $0x60] sm:$0xff]
    %v68 = vld [vmem:[#allocation4 + $0x68] sm:$0xff]
    %v69 = vld [vmem:[#allocation4 + $0x70] sm:$0xff]
    %v70 = vld [vmem:[#allocation4 + $0x78] sm:$0xff]
    %v71 = vstv %s53
    %vm72 = vcmp.lt.u32.totalorder %v55, %v71
    %vm73 = vcmp.lt.u32.totalorder %v56, %v71
    %vm74 = vcmp.lt.u32.totalorder %v57, %v71
    %vm75 = vcmp.lt.u32.totalorder %v58, %v71
    %vm76 = vcmp.lt.u32.totalorder %v59, %v71
    %vm77 = vcmp.lt.u32.totalorder %v60, %v71
    %vm78 = vcmp.lt.u32.totalorder %v61, %v71
    %vm79 = vcmp.lt.u32.totalorder %v62, %v71
    %vm80 = vcmp.lt.u32.totalorder %v63, %v71
    %vm81 = vcmp.lt.u32.totalorder %v64, %v71
    %vm82 = vcmp.lt.u32.totalorder %v65, %v71
    %vm83 = vcmp.lt.u32.totalorder %v66, %v71
    %vm84 = vcmp.lt.u32.totalorder %v67, %v71
    %vm85 = vcmp.lt.u32.totalorder %v68, %v71
    %vm86 = vcmp.lt.u32.totalorder %v69, %v71
    %vm87 = vcmp.lt.u32.totalorder %v70, %v71
    %v88 = vld [vmem:[#allocation7] sm:$0xff]
    %v89 = vld [vmem:[#allocation7 + $0x8] sm:$0xff]
    %v90 = vld [vmem:[#allocation7 + $0x10] sm:$0xff]
    %v91 = vld [vmem:[#allocation7 + $0x18] sm:$0xff]
    %v92 = vld [vmem:[#allocation7 + $0x20] sm:$0xff]
    %v93 = vld [vmem:[#allocation7 + $0x28] sm:$0xff]
    %v94 = vld [vmem:[#allocation7 + $0x30] sm:$0xff]
    %v95 = vld [vmem:[#allocation7 + $0x38] sm:$0xff]
    %v96 = vld [vmem:[#allocation7 + $0x40] sm:$0xff]
    %v97 = vld [vmem:[#allocation7 + $0x48] sm:$0xff]
    %v98 = vld [vmem:[#allocation7 + $0x50] sm:$0xff]
    %v99 = vld [vmem:[#allocation7 + $0x58] sm:$0xff]
    %v100 = vld [vmem:[#allocation7 + $0x60] sm:$0xff]
    %v101 = vld [vmem:[#allocation7 + $0x68] sm:$0xff]
    %v102 = vld [vmem:[#allocation7 + $0x70] sm:$0xff]
    %v103 = vld [vmem:[#allocation7 + $0x78] sm:$0xff]
    %v104 = vstv %s54
    %v105 = vmul.f32 %v88, %v104
    %v106 = vmul.f32 %v89, %v104
    %v107 = vmul.f32 %v90, %v104
    %v108 = vmul.f32 %v91, %v104
    %v109 = vmul.f32 %v92, %v104
    %v110 = vmul.f32 %v93, %v104
    %v111 = vmul.f32 %v94, %v104
    %v112 = vmul.f32 %v95, %v104
    %v113 = vmul.f32 %v96, %v104
    %v114 = vmul.f32 %v97, %v104
    %v115 = vmul.f32 %v98, %v104
    %v116 = vmul.f32 %v99, %v104
    %v117 = vmul.f32 %v100, %v104
    %v118 = vmul.f32 %v101, %v104
    %v119 = vmul.f32 %v102, %v104
    %v120 = vmul.f32 %v103, %v104
    %v121 = vsel %vm72, %v105, 0.0
    %v122 = vsel %vm73, %v106, 0.0
    %v123 = vsel %vm74, %v107, 0.0
    %v124 = vsel %vm75, %v108, 0.0
    %v125 = vsel %vm76, %v109, 0.0
    %v126 = vsel %vm77, %v110, 0.0
    %v127 = vsel %vm78, %v111, 0.0
    %v128 = vsel %vm79, %v112, 0.0
    %v129 = vsel %vm80, %v113, 0.0
    %v130 = vsel %vm81, %v114, 0.0
    %v131 = vsel %vm82, %v115, 0.0
    %v132 = vsel %vm83, %v116, 0.0
    %v133 = vsel %vm84, %v117, 0.0
    %v134 = vsel %vm85, %v118, 0.0
    %v135 = vsel %vm86, %v119, 0.0
    %v136 = vsel %vm87, %v120, 0.0
    %137 = vst [vmem:[#allocation9] sm:$0xff] %v121
    %138 = vst [vmem:[#allocation9 + $0x8] sm:$0xff] %v122
    %139 = vst [vmem:[#allocation9 + $0x10] sm:$0xff] %v123
    %140 = vst [vmem:[#allocation9 + $0x18] sm:$0xff] %v124
    %141 = vst [vmem:[#allocation9 + $0x20] sm:$0xff] %v125
    %142 = vst [vmem:[#allocation9 + $0x28] sm:$0xff] %v126
    %143 = vst [vmem:[#allocation9 + $0x30] sm:$0xff] %v127
    %144 = vst [vmem:[#allocation9 + $0x38] sm:$0xff] %v128
    %145 = vst [vmem:[#allocation9 + $0x40] sm:$0xff] %v129
    %146 = vst [vmem:[#allocation9 + $0x48] sm:$0xff] %v130
    %147 = vst [vmem:[#allocation9 + $0x50] sm:$0xff] %v131
    %148 = vst [vmem:[#allocation9 + $0x58] sm:$0xff] %v132
    %149 = vst [vmem:[#allocation9 + $0x60] sm:$0xff] %v133
    %150 = vst [vmem:[#allocation9 + $0x68] sm:$0xff] %v134
    %151 = vst [vmem:[#allocation9 + $0x70] sm:$0xff] %v135
    %152 = vst [vmem:[#allocation9 + $0x78] sm:$0xff] %v136
    %vm153 = vmpackc.low %vm76, %vm72
    %vm154 = vmpackc.low %vm84, %vm80
    %vm155 = vmpackc.even %vm154, %vm153
    %vm156 = vmpackc.low %vm77, %vm73
    %vm157 = vmpackc.low %vm85, %vm81
    %vm158 = vmpackc.even %vm157, %vm156
    %vm159 = vmpackc.low %vm78, %vm74
    %vm160 = vmpackc.low %vm86, %vm82
    %vm161 = vmpackc.even %vm160, %vm159
    %vm162 = vmpackc.low %vm79, %vm75
    %vm163 = vmpackc.low %vm87, %vm83
    %vm164 = vmpackc.even %vm163, %vm162
    %v165 = vsel %vm155, 16843009, 0
    %v166 = vsel %vm158, 16843009, 0
    %v167 = vsel %vm161, 16843009, 0
    %v168 = vsel %vm164, 16843009, 0
    %169 = vst [vmem:[#allocation10] sm:$0xff] %v165
    %170 = vst [vmem:[#allocation10 + $0x8] sm:$0xff] %v166
    %171 = vst [vmem:[#allocation10 + $0x10] sm:$0xff] %v167
    %172 = vst [vmem:[#allocation10 + $0x18] sm:$0xff] %v168
    // Predicated region
    $region26: #{tpu_custom_call.1} parent=1 // pred_check
      _
    $region27: #{tpu_custom_call.1} parent=1 // pred_check_branch
      %174 = sbr.rel (0) target = $region29
    $region28: #{tpu_custom_call.1} parent=1 // pred_region
      %s176 = ssub.s32 2048, 2048
      %177 = vsyncadd [#allocation6], %s176
      %s178 = sshll.u32 [#allocation9], 4
      %s179 = int_to_ptr.vmem [resolvable:$true] %s178
      %184 = dma.vmem_to_hbm [thread:$0]  %s179, 2048, %s4, [#allocation6], 512, 512, 32
    $region29: #{tpu_custom_call.1} parent=1 // pred_fallthru
      _
    // Predicated region
    $region30: #{tpu_custom_call.1} parent=1 // pred_check
      _
    $region31: #{tpu_custom_call.1} parent=1 // pred_check_branch
      %186 = sbr.rel (0) target = $region33
    $region32: #{tpu_custom_call.1} parent=1 // pred_region
      %s188 = ssub.s32 512, 512
      %189 = vsyncadd [#allocation11], %s188
      %s191 = sshll.u32 [#allocation10], 4
      %s192 = int_to_ptr.vmem [resolvable:$true] %s191
      %194 = dma.vmem_to_hbm [thread:$0]  %s192, 512, %s5, [#allocation11]
    $region33: #{tpu_custom_call.1} parent=1 // pred_fallthru
      _
    // Predicated region
    $region34: #{tpu_custom_call.1} parent=1 // pred_check
      _
    $region35: #{tpu_custom_call.1} parent=1 // pred_check_branch
      %196 = sbr.rel (0) target = $region37
    $region36: #{tpu_custom_call.1} parent=1 // pred_region
      %197 = dma.done [#allocation6], 2048
    $region37: #{tpu_custom_call.1} parent=1 // pred_fallthru
      _
    // Predicated region
    $region38: #{tpu_custom_call.1} parent=1 // pred_check
      _
    $region39: #{tpu_custom_call.1} parent=1 // pred_check_branch
      %199 = sbr.rel (0) target = $region41
    $region40: #{tpu_custom_call.1} parent=1 // pred_region
      %200 = dma.done [#allocation11], 512
    $region41: #{tpu_custom_call.1} parent=1 // pred_fallthru
      _
    %201 = vsyncpa [#allocation5], 1
    %202 = vsyncpa [#allocation8], 1
    %203 = vsyncpa [#allocation6], 1
    %204 = vsyncpa [#allocation11], 1

</llo_original>
